<compile_context>
chip_gen: v5e
topology: v5e:2x2
jax: 0.10.0
libtpu: 0.0.40
codegen_flags: <defaults>
</compile_context>

<pallas_src>
import jax
import jax.numpy as jnp
from jax.experimental import pallas as pl
from jax.experimental.pallas import tpu as pltpu

H_PAD = 128  # padded hidden width (lane-dense)
C_PAD = 128  # padded class width (lane-dense)


def _round_up(a, b):
    return (a + b - 1) // b * b


def mlp_kernel(x_ref, w1_ref, b1_ref, w2_ref, b2_ref, w3_ref, b3_ref, o_ref):
    # x_ref: (TM, D) f32; wN_ref: (in, out_pad) bf16; bN_ref: (1, out_pad) f32;
    # o_ref: (TM, C_PAD) f32.  MXU: bf16 x bf16 -> f32 accumulate; VPU: f32.
    x = x_ref[...].astype(jnp.bfloat16)
    h = jnp.dot(x, w1_ref[...], preferred_element_type=jnp.float32) + b1_ref[...]
    h = jnp.maximum(h, 0.0)
    h = jnp.dot(h.astype(jnp.bfloat16), w2_ref[...],
                preferred_element_type=jnp.float32) + b2_ref[...]
    h = jnp.maximum(h, 0.0)
    h = jnp.dot(h.astype(jnp.bfloat16), w3_ref[...],
                preferred_element_type=jnp.float32) + b3_ref[...]
    o_ref[...] = jnp.maximum(h, 0.0)


def _mlp_forward_padded(xb, params, *, tm=None):
    """xb: (B, D) f32 -> (B, C_PAD) f32 via a batched, weight-resident kernel."""
    w1, b1 = params["w1"], params["b1"]
    w2, b2 = params["w2"], params["b2"]
    w3, b3 = params["w3"], params["b3"]

    xb = xb.astype(jnp.float32)
    B, D = xb.shape
    assert D == w1.shape[0], "input_size mismatch vs params"
    HP, CP = w1.shape[1], w3.shape[1]

    if tm is None:
        # Big MXU-friendly tile when batched; minimal 8-row tile for tiny B.
        tm = 256 if B >= 256 else _round_up(B, 8)
    Bp = _round_up(B, tm)
    if Bp != B:
        xb = jnp.pad(xb, ((0, Bp - B), (0, 0)))
    grid = (Bp // tm,)

    flops = 2 * Bp * (D * HP + HP * HP + HP * CP)
    bytes_accessed = (Bp * D * 4 + Bp * CP * 4
                      + (w1.size + w2.size + w3.size) * 2
                      + (b1.size + b2.size + b3.size) * 4)

    out = pl.pallas_call(
        mlp_kernel,
        out_shape=jax.ShapeDtypeStruct((Bp, CP), jnp.float32),
        grid_spec=pltpu.PrefetchScalarGridSpec(
            num_scalar_prefetch=0,
            grid=grid,
            in_specs=[
                pl.BlockSpec((tm, D), lambda i: (i, 0)),      # x tile
                pl.BlockSpec(w1.shape, lambda i: (0, 0)),     # weights resident
                pl.BlockSpec(b1.shape, lambda i: (0, 0)),
                pl.BlockSpec(w2.shape, lambda i: (0, 0)),
                pl.BlockSpec(b2.shape, lambda i: (0, 0)),
                pl.BlockSpec(w3.shape, lambda i: (0, 0)),
                pl.BlockSpec(b3.shape, lambda i: (0, 0)),
            ],
            out_specs=pl.BlockSpec((tm, CP), lambda i: (i, 0)),
        ),
        compiler_params=pltpu.CompilerParams(
            dimension_semantics=("parallel",)),   # v7x: 2 TCs split the batch
        cost_estimate=pl.CostEstimate(
            flops=flops, transcendentals=0, bytes_accessed=bytes_accessed),
    )(xb, w1, b1, w2, b2, w3, b3)
    return out[:B]


def pre_model_forward(x, params, num_classes):
    """Exact semantics of preModel.forward: flatten the WHOLE input, 3x(Linear+ReLU)."""
    x_flat = jnp.reshape(x, (1, -1)).astype(jnp.float32)
    out = _mlp_forward_padded(x_flat, params)
    return out[0, :num_classes]


def pre_model_forward_batched(xb, params, num_classes):
    """Throughput path: apply the same MLP to a batch of pre-flattened samples."""
    out = _mlp_forward_padded(xb, params)
    return out[:, :num_classes]


def init_params(key, input_size, hidden_size, num_classes,
                hidden_pad=H_PAD, class_pad=C_PAD):
    """Kaiming-normal weights / uniform(-1/sqrt(fan_in)) biases (PyTorch defaults),
    stored as (in, out), zero-padded to lane-dense widths, weights cast to bf16."""
    assert hidden_size <= hidden_pad and num_classes <= class_pad
    ks = jax.random.split(key, 6)

    def kaiming(k, fan_in, fan_out):
        std = jnp.sqrt(2.0 / fan_in)
        return jax.random.normal(k, (fan_in, fan_out), jnp.float32) * std

    def bias(k, fan_in, fan_out):
        bound = 1.0 / jnp.sqrt(fan_in)
        return jax.random.uniform(k, (1, fan_out), jnp.float32, -bound, bound)

    w1 = kaiming(ks[0], input_size, hidden_size)
    b1 = bias(ks[1], input_size, hidden_size)
    w2 = kaiming(ks[2], hidden_size, hidden_size)
    b2 = bias(ks[3], hidden_size, hidden_size)
    w3 = kaiming(ks[4], hidden_size, num_classes)
    b3 = bias(ks[5], hidden_size, num_classes)

    def pad_w(w, in_pad, out_pad):
        fi, fo = w.shape
        return jnp.pad(w, ((0, in_pad - fi), (0, out_pad - fo)))

    def pad_b(b, out_pad):
        return jnp.pad(b, ((0, 0), (0, out_pad - b.shape[1])))

    return {
        "w1": pad_w(w1, input_size, hidden_pad).astype(jnp.bfloat16),
        "b1": pad_b(b1, hidden_pad),
        "w2": pad_w(w2, hidden_pad, hidden_pad).astype(jnp.bfloat16),
        "b2": pad_b(b2, hidden_pad),
        "w3": pad_w(w3, hidden_pad, class_pad).astype(jnp.bfloat16),
        "b3": pad_b(b3, class_pad),
    }


if __name__ == "__main__":
    key = jax.random.PRNGKey(0)
    kx, kp, kb = jax.random.split(key, 3)

    # torch.flatten(x) flattens everything, so input_size = prod(x.shape)
    x = jax.random.normal(kx, (2, 4, 16, 16), jnp.float32)
    input_size = x.size            # 2048
    hidden_size = 32
    num_classes = 8

    params = init_params(kp, input_size, hidden_size, num_classes)

    # 1) Module-semantics path (single flattened sample).
    scores = pre_model_forward(x, params, num_classes)
    jax.block_until_ready(scores)
    assert scores.shape == (num_classes,)

    # 2) Batched throughput path (same per-sample math, amortized weight DMA).
    B = 16
    xb = jax.random.normal(kb, (B, input_size), jnp.float32)
    batch_scores = pre_model_forward_batched(xb, params, num_classes)
    jax.block_until_ready(batch_scores)
    assert batch_scores.shape == (B, num_classes)

    # Plain-JAX reference using the same bf16-stored weights / f32 accumulation.
    def ref(xmat):
        h = jnp.maximum(jnp.dot(xmat.astype(jnp.bfloat16), params["w1"],
                                preferred_element_type=jnp.float32) + params["b1"], 0.0)
        h = jnp.maximum(jnp.dot(h.astype(jnp.bfloat16), params["w2"],
                                preferred_element_type=jnp.float32) + params["b2"], 0.0)
        h = jnp.maximum(jnp.dot(h.astype(jnp.bfloat16), params["w3"],
                                preferred_element_type=jnp.float32) + params["b3"], 0.0)
        return h[:, :num_classes]

    ref_single = ref(x.reshape(1, -1))[0]
    ref_batch = ref(xb)
    assert jnp.allclose(scores, ref_single, atol=2e-2, rtol=2e-2), "single-sample mismatch"
    assert jnp.allclose(batch_scores, ref_batch, atol=2e-2, rtol=2e-2), "batched mismatch"

    print("KERNEL_OK")
</pallas_src>

<mosaic_0001>
module attributes {stable_mosaic.version = 11 : i64} {
  func.func @mlp_kernel(%arg0: i32, %arg1: memref<8x2048xf32, #tpu.memory_space<vmem>>, %arg2: memref<2048x128xbf16, #tpu.memory_space<vmem>>, %arg3: memref<1x128xf32, #tpu.memory_space<vmem>>, %arg4: memref<128x128xbf16, #tpu.memory_space<vmem>>, %arg5: memref<1x128xf32, #tpu.memory_space<vmem>>, %arg6: memref<128x128xbf16, #tpu.memory_space<vmem>>, %arg7: memref<1x128xf32, #tpu.memory_space<vmem>>, %arg8: memref<8x128xf32, #tpu.memory_space<vmem>>) attributes {dimension_semantics = [#tpu.dimension_semantics<parallel>], iteration_bounds = array<i64: 1>, scalar_prefetch = 0 : i64, scratch_operands = 0 : i64, tpu.core_type = #tpu.core_type<tc>, window_params = [{transform_indices = @transform_0, window_bounds = array<i64: 8, 2048>}, {pipeline_mode = #tpu.pipeline_mode<synchronous>, transform_indices = @transform_1, window_bounds = array<i64: 2048, 128>}, {pipeline_mode = #tpu.pipeline_mode<synchronous>, transform_indices = @transform_2, window_bounds = array<i64: 1, 128>}, {pipeline_mode = #tpu.pipeline_mode<synchronous>, transform_indices = @transform_3, window_bounds = array<i64: 128, 128>}, {pipeline_mode = #tpu.pipeline_mode<synchronous>, transform_indices = @transform_4, window_bounds = array<i64: 1, 128>}, {pipeline_mode = #tpu.pipeline_mode<synchronous>, transform_indices = @transform_5, window_bounds = array<i64: 128, 128>}, {pipeline_mode = #tpu.pipeline_mode<synchronous>, transform_indices = @transform_6, window_bounds = array<i64: 1, 128>}, {transform_indices = @transform_7, window_bounds = array<i64: 8, 128>}]} {
    %c0 = arith.constant 0 : index
    %c0_0 = arith.constant 0 : index
    %0 = vector.load %arg1[%c0, %c0_0] : memref<8x2048xf32, #tpu.memory_space<vmem>>, vector<8x2048xf32>
    %1 = arith.truncf %0 : vector<8x2048xf32> to vector<8x2048xbf16>
    %c0_1 = arith.constant 0 : index
    %c0_2 = arith.constant 0 : index
    %2 = vector.load %arg2[%c0_1, %c0_2] : memref<2048x128xbf16, #tpu.memory_space<vmem>>, vector<2048x128xbf16>
    %cst = arith.constant dense<0.000000e+00> : vector<8x128xf32>
    %3 = tpu.matmul %1, %2, %cst {dimension_numbers = #tpu.dot_dimension_numbers<[1], [0], [0], [1], [0, 0, 1, 1], [], []>} : vector<8x2048xbf16>, vector<2048x128xbf16>, vector<8x128xf32> -> vector<8x128xf32>
    %c0_3 = arith.constant 0 : index
    %c0_4 = arith.constant 0 : index
    %4 = vector.load %arg3[%c0_3, %c0_4] : memref<1x128xf32, #tpu.memory_space<vmem>>, vector<1x128xf32>
    %5 = vector.broadcast %4 : vector<1x128xf32> to vector<8x128xf32>
    %6 = arith.addf %3, %5 : vector<8x128xf32>
    %cst_5 = arith.constant 0.000000e+00 : f32
    %7 = vector.broadcast %cst_5 : f32 to vector<8x128xf32>
    %8 = arith.maximumf %6, %7 : vector<8x128xf32>
    %9 = arith.truncf %8 : vector<8x128xf32> to vector<8x128xbf16>
    %c0_6 = arith.constant 0 : index
    %c0_7 = arith.constant 0 : index
    %10 = vector.load %arg4[%c0_6, %c0_7] : memref<128x128xbf16, #tpu.memory_space<vmem>>, vector<128x128xbf16>
    %cst_8 = arith.constant dense<0.000000e+00> : vector<8x128xf32>
    %11 = tpu.matmul %9, %10, %cst_8 {dimension_numbers = #tpu.dot_dimension_numbers<[1], [0], [0], [1], [0, 0, 1, 1], [], []>} : vector<8x128xbf16>, vector<128x128xbf16>, vector<8x128xf32> -> vector<8x128xf32>
    %c0_9 = arith.constant 0 : index
    %c0_10 = arith.constant 0 : index
    %12 = vector.load %arg5[%c0_9, %c0_10] : memref<1x128xf32, #tpu.memory_space<vmem>>, vector<1x128xf32>
    %13 = vector.broadcast %12 : vector<1x128xf32> to vector<8x128xf32>
    %14 = arith.addf %11, %13 : vector<8x128xf32>
    %cst_11 = arith.constant 0.000000e+00 : f32
    %15 = vector.broadcast %cst_11 : f32 to vector<8x128xf32>
    %16 = arith.maximumf %14, %15 : vector<8x128xf32>
    %17 = arith.truncf %16 : vector<8x128xf32> to vector<8x128xbf16>
    %c0_12 = arith.constant 0 : index
    %c0_13 = arith.constant 0 : index
    %18 = vector.load %arg6[%c0_12, %c0_13] : memref<128x128xbf16, #tpu.memory_space<vmem>>, vector<128x128xbf16>
    %cst_14 = arith.constant dense<0.000000e+00> : vector<8x128xf32>
    %19 = tpu.matmul %17, %18, %cst_14 {dimension_numbers = #tpu.dot_dimension_numbers<[1], [0], [0], [1], [0, 0, 1, 1], [], []>} : vector<8x128xbf16>, vector<128x128xbf16>, vector<8x128xf32> -> vector<8x128xf32>
    %c0_15 = arith.constant 0 : index
    %c0_16 = arith.constant 0 : index
    %20 = vector.load %arg7[%c0_15, %c0_16] : memref<1x128xf32, #tpu.memory_space<vmem>>, vector<1x128xf32>
    %21 = vector.broadcast %20 : vector<1x128xf32> to vector<8x128xf32>
    %22 = arith.addf %19, %21 : vector<8x128xf32>
    %cst_17 = arith.constant 0.000000e+00 : f32
    %23 = vector.broadcast %cst_17 : f32 to vector<8x128xf32>
    %24 = arith.maximumf %22, %23 : vector<8x128xf32>
    %c0_18 = arith.constant 0 : index
    %c0_19 = arith.constant 0 : index
    %25 = vector.load %arg8[%c0_18, %c0_19] : memref<8x128xf32, #tpu.memory_space<vmem>>, vector<8x128xf32>
    tpu.vector_store %arg8[%c0_18, %c0_19], %24 {strides = array<i32>} : memref<8x128xf32, #tpu.memory_space<vmem>>, vector<8x128xf32>,
    return
  }
  func.func @transform_0(%arg0: i32) -> (i32, i32) {
    %c0_i32 = arith.constant 0 : i32
    %c0_i32_0 = arith.constant 0 : i32
    return %arg0, %c0_i32 : i32, i32
  }
  func.func @transform_1(%arg0: i32) -> (i32, i32) {
    %c0_i32 = arith.constant 0 : i32
    %c0_i32_0 = arith.constant 0 : i32
    %c0_i32_1 = arith.constant 0 : i32
    return %c0_i32, %c0_i32_0 : i32, i32
  }
  func.func @transform_2(%arg0: i32) -> (i32, i32) {
    %c0_i32 = arith.constant 0 : i32
    %c0_i32_0 = arith.constant 0 : i32
    %c0_i32_1 = arith.constant 0 : i32
    return %c0_i32, %c0_i32_0 : i32, i32
  }
  func.func @transform_3(%arg0: i32) -> (i32, i32) {
    %c0_i32 = arith.constant 0 : i32
    %c0_i32_0 = arith.constant 0 : i32
    %c0_i32_1 = arith.constant 0 : i32
    return %c0_i32, %c0_i32_0 : i32, i32
  }
  func.func @transform_4(%arg0: i32) -> (i32, i32) {
    %c0_i32 = arith.constant 0 : i32
    %c0_i32_0 = arith.constant 0 : i32
    %c0_i32_1 = arith.constant 0 : i32
    return %c0_i32, %c0_i32_0 : i32, i32
  }
  func.func @transform_5(%arg0: i32) -> (i32, i32) {
    %c0_i32 = arith.constant 0 : i32
    %c0_i32_0 = arith.constant 0 : i32
    %c0_i32_1 = arith.constant 0 : i32
    return %c0_i32, %c0_i32_0 : i32, i32
  }
  func.func @transform_6(%arg0: i32) -> (i32, i32) {
    %c0_i32 = arith.constant 0 : i32
    %c0_i32_0 = arith.constant 0 : i32
    %c0_i32_1 = arith.constant 0 : i32
    return %c0_i32, %c0_i32_0 : i32, i32
  }
  func.func @transform_7(%arg0: i32) -> (i32, i32) {
    %c0_i32 = arith.constant 0 : i32
    %c0_i32_0 = arith.constant 0 : i32
    return %arg0, %c0_i32 : i32, i32
  }
}

</mosaic_0001>

<llo_original>
// kernel: tpu_custom_call.1
$region0: #{tpu_custom_call.1}
  #allocation0 [shape = 'u32[]', space=smem, size = 0x4, offset = 0x4, fixed_abs, tag = 'smem constant byte address 0x4 - core index']
  #allocation1 [shape = 'u32[72,128]{1,0:T(1,128)}', space=vmem, size = 0x9000, scoped, tag = 'internal scratch']
  %s0 = inlined_call_operand.hbm [shape: f32[8,2048], index: 0, kind: input, shape index: {}]
  %s1 = inlined_call_operand.hbm [shape: bf16[2048,128], index: 1, kind: input, shape index: {}]
  %s2 = inlined_call_operand.vmem [shape: f32[1,128], index: 2, kind: input, shape index: {}]
  %s3 = inlined_call_operand.hbm [shape: bf16[128,128], index: 3, kind: input, shape index: {}]
  %s4 = inlined_call_operand.vmem [shape: f32[1,128], index: 4, kind: input, shape index: {}]
  %s5 = inlined_call_operand.hbm [shape: bf16[128,128], index: 5, kind: input, shape index: {}]
  %s6 = inlined_call_operand.vmem [shape: f32[1,128], index: 6, kind: input, shape index: {}]
  %s7 = inlined_call_operand.hbm [shape: f32[8,128], index: 7, kind: output, shape index: {}]
  %s8 = sld [smem:[#allocation0]]
  $region54: #{tpu_custom_call.1} parent=0
    _
  %s10 = ssub.s32 1, %s8
  %s11 = scalar_select 0, %s10, %s8
  $region1: #{tpu_custom_call.1} parent=0
    #allocation2 [shape = 'u8[65536]{0}', space=vmem, size = 0x10000, scoped, tag = 'input window, operand 0, single buffered']
    #allocation3 [shape = 's32[1]{0}', space=sflag, size = 0x4, scoped, tag = 'scoped memory for tpu_custom_call.1']
    #allocation4 [shape = 's32[1]{0}', space=sflag, size = 0x4, scoped, tag = 'scoped memory for tpu_custom_call.1']
    #allocation5 [shape = 'u8[524288]{0}', space=vmem, size = 0x80000, scoped, tag = 'input window, operand 1, single buffered']
    #allocation6 [shape = 's32[1]{0}', space=sflag, size = 0x4, scoped, tag = 'scoped memory for tpu_custom_call.1']
    #allocation7 [shape = 'u8[32768]{0}', space=vmem, size = 0x8000, scoped, tag = 'input window, operand 3, single buffered']
    #allocation8 [shape = 'u8[32768]{0}', space=vmem, size = 0x8000, scoped, tag = 'input window, operand 5, single buffered']
    #allocation9 [shape = 's32[1]{0}', space=sflag, size = 0x4, scoped, tag = 'scoped memory for tpu_custom_call.1']
    #allocation10 [shape = 'u8[4096]{0}', space=vmem, size = 0x1000, scoped, tag = 'output window, operand 0, single buffered']
    %12 = vsyncpa [#allocation3], 0
    %13 = vsyncpa [#allocation6], 0
    %14 = vsyncpa [#allocation9], 0
    %15 = vsyncpa [#allocation4], 0
    // Predicated region
    $region2: #{tpu_custom_call.1} parent=1 // pred_check
      _
    $region3: #{tpu_custom_call.1} parent=1 // pred_check_branch
      %17 = sbr.rel (0) target = $region5
    $region4: #{tpu_custom_call.1} parent=1 // pred_region
      %19 = vsyncadd [#allocation3], 0
      %s21 = sshll.u32 %s0, 4
      %s22 = int_to_ptr.hbm [resolvable:$true] %s21
      %s23 = sshll.u32 [#allocation2], 4
      %s24 = int_to_ptr.vmem [resolvable:$true] %s23
      %26 = dma.hbm_to_vmem [thread:$0]  %s22, 2048, %s24, [#allocation3]
    $region5: #{tpu_custom_call.1} parent=1 // pred_fallthru
      _
    // Predicated region
    $region6: #{tpu_custom_call.1} parent=1 // pred_check
      _
    $region7: #{tpu_custom_call.1} parent=1 // pred_check_branch
      %28 = sbr.rel (0) target = $region9
    $region8: #{tpu_custom_call.1} parent=1 // pred_region
      %30 = vsyncadd [#allocation6], 0
      %s31 = sshll.u32 %s1, 4
      %s32 = int_to_ptr.hbm [resolvable:$true] %s31
      %s33 = sshll.u32 [#allocation5], 4
      %s34 = int_to_ptr.vmem [resolvable:$true] %s33
      %39 = dma.hbm_to_vmem [thread:$0]  %s32, 16384, %s34, [#allocation6], 64, 64, 4
    $region9: #{tpu_custom_call.1} parent=1 // pred_fallthru
      _
    // Predicated region
    $region10: #{tpu_custom_call.1} parent=1 // pred_check
      _
    $region11: #{tpu_custom_call.1} parent=1 // pred_check_branch
      %41 = sbr.rel (0) target = $region13
    $region12: #{tpu_custom_call.1} parent=1 // pred_region
      _
    $region13: #{tpu_custom_call.1} parent=1 // pred_fallthru
      _
    // Predicated region
    $region14: #{tpu_custom_call.1} parent=1 // pred_check
      _
    $region15: #{tpu_custom_call.1} parent=1 // pred_check_branch
      %43 = sbr.rel (0) target = $region17
    $region16: #{tpu_custom_call.1} parent=1 // pred_region
      %45 = vsyncadd [#allocation6], 0
      %s46 = sshll.u32 %s3, 4
      %s47 = int_to_ptr.hbm [resolvable:$true] %s46
      %s48 = sshll.u32 [#allocation7], 4
      %s49 = int_to_ptr.vmem [resolvable:$true] %s48
      %54 = dma.hbm_to_vmem [thread:$0]  %s47, 1024, %s49, [#allocation6], 64, 64, 4
    $region17: #{tpu_custom_call.1} parent=1 // pred_fallthru
      _
    // Predicated region
    $region18: #{tpu_custom_call.1} parent=1 // pred_check
      _
    $region19: #{tpu_custom_call.1} parent=1 // pred_check_branch
      %56 = sbr.rel (0) target = $region21
    $region20: #{tpu_custom_call.1} parent=1 // pred_region
      _
    $region21: #{tpu_custom_call.1} parent=1 // pred_fallthru
      _
    // Predicated region
    $region22: #{tpu_custom_call.1} parent=1 // pred_check
      _
    $region23: #{tpu_custom_call.1} parent=1 // pred_check_branch
      %58 = sbr.rel (0) target = $region25
    $region24: #{tpu_custom_call.1} parent=1 // pred_region
      %60 = vsyncadd [#allocation9], 0
      %s61 = sshll.u32 %s5, 4
      %s62 = int_to_ptr.hbm [resolvable:$true] %s61
      %s63 = sshll.u32 [#allocation8], 4
      %s64 = int_to_ptr.vmem [resolvable:$true] %s63
      %69 = dma.hbm_to_vmem [thread:$0]  %s62, 1024, %s64, [#allocation9], 64, 64, 4
    $region25: #{tpu_custom_call.1} parent=1 // pred_fallthru
      _
    // Predicated region
    $region26: #{tpu_custom_call.1} parent=1 // pred_check
      _
    $region27: #{tpu_custom_call.1} parent=1 // pred_check_branch
      %71 = sbr.rel (0) target = $region29
    $region28: #{tpu_custom_call.1} parent=1 // pred_region
      _
    $region29: #{tpu_custom_call.1} parent=1 // pred_fallthru
      _
    // Predicated region
    $region30: #{tpu_custom_call.1} parent=1 // pred_check
      _
    $region31: #{tpu_custom_call.1} parent=1 // pred_check_branch
      %73 = sbr.rel (0) target = $region33
    $region32: #{tpu_custom_call.1} parent=1 // pred_region
      %75 = dma.done [#allocation3], 2048
    $region33: #{tpu_custom_call.1} parent=1 // pred_fallthru
      _
    // Predicated region
    $region34: #{tpu_custom_call.1} parent=1 // pred_check
      _
    $region35: #{tpu_custom_call.1} parent=1 // pred_check_branch
      %77 = sbr.rel (0) target = $region37
    $region36: #{tpu_custom_call.1} parent=1 // pred_region
      %79 = dma.done [#allocation6], 16384
    $region37: #{tpu_custom_call.1} parent=1 // pred_fallthru
      _
    // Predicated region
    $region38: #{tpu_custom_call.1} parent=1 // pred_check
      _
    $region39: #{tpu_custom_call.1} parent=1 // pred_check_branch
      %81 = sbr.rel (0) target = $region41
    $region40: #{tpu_custom_call.1} parent=1 // pred_region
      %83 = dma.done [#allocation6], 1024
    $region41: #{tpu_custom_call.1} parent=1 // pred_fallthru
      _
    // Predicated region
    $region42: #{tpu_custom_call.1} parent=1 // pred_check
      _
    $region43: #{tpu_custom_call.1} parent=1 // pred_check_branch
      %85 = sbr.rel (0) target = $region45
    $region44: #{tpu_custom_call.1} parent=1 // pred_region
      %87 = dma.done [#allocation9], 1024
    $region45: #{tpu_custom_call.1} parent=1 // pred_fallthru
      _
    %v88 = vld [vmem:[#allocation2] sm:$0xff]
    %v89 = vld [vmem:[#allocation2 + $0x8] sm:$0xff]
    %v90 = vld [vmem:[#allocation2 + $0x10] sm:$0xff]
    %v91 = vld [vmem:[#allocation2 + $0x18] sm:$0xff]
    %v92 = vld [vmem:[#allocation2 + $0x20] sm:$0xff]
    %v93 = vld [vmem:[#allocation2 + $0x28] sm:$0xff]
    %v94 = vld [vmem:[#allocation2 + $0x30] sm:$0xff]
    %v95 = vld [vmem:[#allocation2 + $0x38] sm:$0xff]
    %v96 = vld [vmem:[#allocation2 + $0x40] sm:$0xff]
    %v97 = vld [vmem:[#allocation2 + $0x48] sm:$0xff]
    %v98 = vld [vmem:[#allocation2 + $0x50] sm:$0xff]
    %v99 = vld [vmem:[#allocation2 + $0x58] sm:$0xff]
    %v100 = vld [vmem:[#allocation2 + $0x60] sm:$0xff]
    %v101 = vld [vmem:[#allocation2 + $0x68] sm:$0xff]
    %v102 = vld [vmem:[#allocation2 + $0x70] sm:$0xff]
    %v103 = vld [vmem:[#allocation2 + $0x78] sm:$0xff]
    %v104 = vpack.c.bf16 %v88, %v88
    %v105 = vpack.c.bf16 %v89, %v89
    %v106 = vpack.c.bf16 %v90, %v90
    %v107 = vpack.c.bf16 %v91, %v91
    %v108 = vpack.c.bf16 %v92, %v92
    %v109 = vpack.c.bf16 %v93, %v93
    %v110 = vpack.c.bf16 %v94, %v94
    %v111 = vpack.c.bf16 %v95, %v95
    %v112 = vpack.c.bf16 %v96, %v96
    %v113 = vpack.c.bf16 %v97, %v97
    %v114 = vpack.c.bf16 %v98, %v98
    %v115 = vpack.c.bf16 %v99, %v99
    %v116 = vpack.c.bf16 %v100, %v100
    %v117 = vpack.c.bf16 %v101, %v101
    %v118 = vpack.c.bf16 %v102, %v102
    %v119 = vpack.c.bf16 %v103, %v103
    %v120 = vld [vmem:[#allocation5] sm:$0xf]
    %v121 = vld [vmem:[#allocation5 + $0x4] sm:$0xf]
    %v122 = vld [vmem:[#allocation5 + $0x8] sm:$0xf]
    %v123 = vld [vmem:[#allocation5 + $0xc] sm:$0xf]
    %v124 = vld [vmem:[#allocation5 + $0x10] sm:$0xf]
    %v125 = vld [vmem:[#allocation5 + $0x14] sm:$0xf]
    %v126 = vld [vmem:[#allocation5 + $0x18] sm:$0xf]
    %v127 = vld [vmem:[#allocation5 + $0x1c] sm:$0xf]
    %v128 = vld [vmem:[#allocation5 + $0x20] sm:$0xf]
    %v129 = vld [vmem:[#allocation5 + $0x24] sm:$0xf]
    %v130 = vld [vmem:[#allocation5 + $0x28] sm:$0xf]
    %v131 = vld [vmem:[#allocation5 + $0x2c] sm:$0xf]
    %v132 = vld [vmem:[#allocation5 + $0x30] sm:$0xf]
    %v133 = vld [vmem:[#allocation5 + $0x34] sm:$0xf]
    %v134 = vld [vmem:[#allocation5 + $0x38] sm:$0xf]
    %v135 = vld [vmem:[#allocation5 + $0x3c] sm:$0xf]
    %v136 = vld [vmem:[#allocation5 + $0x40] sm:$0xf]
    %v137 = vld [vmem:[#allocation5 + $0x44] sm:$0xf]
    %v138 = vld [vmem:[#allocation5 + $0x48] sm:$0xf]
    %v139 = vld [vmem:[#allocation5 + $0x4c] sm:$0xf]
    %v140 = vld [vmem:[#allocation5 + $0x50] sm:$0xf]
    %v141 = vld [vmem:[#allocation5 + $0x54] sm:$0xf]
    %v142 = vld [vmem:[#allocation5 + $0x58] sm:$0xf]
    %v143 = vld [vmem:[#allocation5 + $0x5c] sm:$0xf]
    %v144 = vld [vmem:[#allocation5 + $0x60] sm:$0xf]
    %v145 = vld [vmem:[#allocation5 + $0x64] sm:$0xf]
    %v146 = vld [vmem:[#allocation5 + $0x68] sm:$0xf]
    %v147 = vld [vmem:[#allocation5 + $0x6c] sm:$0xf]
    %v148 = vld [vmem:[#allocation5 + $0x70] sm:$0xf]
    %v149 = vld [vmem:[#allocation5 + $0x74] sm:$0xf]
    %v150 = vld [vmem:[#allocation5 + $0x78] sm:$0xf]
    %v151 = vld [vmem:[#allocation5 + $0x7c] sm:$0xf]
    %v152 = vld [vmem:[#allocation5 + $0x80] sm:$0xf]
    %v153 = vld [vmem:[#allocation5 + $0x84] sm:$0xf]
    %v154 = vld [vmem:[#allocation5 + $0x88] sm:$0xf]
    %v155 = vld [vmem:[#allocation5 + $0x8c] sm:$0xf]
    %v156 = vld [vmem:[#allocation5 + $0x90] sm:$0xf]
    %v157 = vld [vmem:[#allocation5 + $0x94] sm:$0xf]
    %v158 = vld [vmem:[#allocation5 + $0x98] sm:$0xf]
    %v159 = vld [vmem:[#allocation5 + $0x9c] sm:$0xf]
    %v160 = vld [vmem:[#allocation5 + $0xa0] sm:$0xf]
    %v161 = vld [vmem:[#allocation5 + $0xa4] sm:$0xf]
    %v162 = vld [vmem:[#allocation5 + $0xa8] sm:$0xf]
    %v163 = vld [vmem:[#allocation5 + $0xac] sm:$0xf]
    %v164 = vld [vmem:[#allocation5 + $0xb0] sm:$0xf]
    %v165 = vld [vmem:[#allocation5 + $0xb4] sm:$0xf]
    %v166 = vld [vmem:[#allocation5 + $0xb8] sm:$0xf]
    %v167 = vld [vmem:[#allocation5 + $0xbc] sm:$0xf]
    %v168 = vld [vmem:[#allocation5 + $0xc0] sm:$0xf]
    %v169 = vld [vmem:[#allocation5 + $0xc4] sm:$0xf]
    %v170 = vld [vmem:[#allocation5 + $0xc8] sm:$0xf]
    %v171 = vld [vmem:[#allocation5 + $0xcc] sm:$0xf]
    %v172 = vld [vmem:[#allocation5 + $0xd0] sm:$0xf]
    %v173 = vld [vmem:[#allocation5 + $0xd4] sm:$0xf]
    %v174 = vld [vmem:[#allocation5 + $0xd8] sm:$0xf]
    %v175 = vld [vmem:[#allocation5 + $0xdc] sm:$0xf]
    %v176 = vld [vmem:[#allocation5 + $0xe0] sm:$0xf]
    %v177 = vld [vmem:[#allocation5 + $0xe4] sm:$0xf]
    %v178 = vld [vmem:[#allocation5 + $0xe8] sm:$0xf]
    %v179 = vld [vmem:[#allocation5 + $0xec] sm:$0xf]
    %v180 = vld [vmem:[#allocation5 + $0xf0] sm:$0xf]
    %v181 = vld [vmem:[#allocation5 + $0xf4] sm:$0xf]
    %v182 = vld [vmem:[#allocation5 + $0xf8] sm:$0xf]
    %v183 = vld [vmem:[#allocation5 + $0xfc] sm:$0xf]
    %v184 = vld [vmem:[#allocation5 + $0x100] sm:$0xf]
    %v185 = vld [vmem:[#allocation5 + $0x104] sm:$0xf]
    %v186 = vld [vmem:[#allocation5 + $0x108] sm:$0xf]
    %v187 = vld [vmem:[#allocation5 + $0x10c] sm:$0xf]
    %v188 = vld [vmem:[#allocation5 + $0x110] sm:$0xf]
    %v189 = vld [vmem:[#allocation5 + $0x114] sm:$0xf]
    %v190 = vld [vmem:[#allocation5 + $0x118] sm:$0xf]
    %v191 = vld [vmem:[#allocation5 + $0x11c] sm:$0xf]
    %v192 = vld [vmem:[#allocation5 + $0x120] sm:$0xf]
    %v193 = vld [vmem:[#allocation5 + $0x124] sm:$0xf]
    %v194 = vld [vmem:[#allocation5 + $0x128] sm:$0xf]
    %v195 = vld [vmem:[#allocation5 + $0x12c] sm:$0xf]
    %v196 = vld [vmem:[#allocation5 + $0x130] sm:$0xf]
    %v197 = vld [vmem:[#allocation5 + $0x134] sm:$0xf]
    %v198 = vld [vmem:[#allocation5 + $0x138] sm:$0xf]
    %v199 = vld [vmem:[#allocation5 + $0x13c] sm:$0xf]
    %v200 = vld [vmem:[#allocation5 + $0x140] sm:$0xf]
    %v201 = vld [vmem:[#allocation5 + $0x144] sm:$0xf]
    %v202 = vld [vmem:[#allocation5 + $0x148] sm:$0xf]
    %v203 = vld [vmem:[#allocation5 + $0x14c] sm:$0xf]
    %v204 = vld [vmem:[#allocation5 + $0x150] sm:$0xf]
    %v205 = vld [vmem:[#allocation5 + $0x154] sm:$0xf]
    %v206 = vld [vmem:[#allocation5 + $0x158] sm:$0xf]
    %v207 = vld [vmem:[#allocation5 + $0x15c] sm:$0xf]
    %v208 = vld [vmem:[#allocation5 + $0x160] sm:$0xf]
    %v209 = vld [vmem:[#allocation5 + $0x164] sm:$0xf]
    %v210 = vld [vmem:[#allocation5 + $0x168] sm:$0xf]
    %v211 = vld [vmem:[#allocation5 + $0x16c] sm:$0xf]
    %v212 = vld [vmem:[#allocation5 + $0x170] sm:$0xf]
    %v213 = vld [vmem:[#allocation5 + $0x174] sm:$0xf]
    %v214 = vld [vmem:[#allocation5 + $0x178] sm:$0xf]
    %v215 = vld [vmem:[#allocation5 + $0x17c] sm:$0xf]
    %v216 = vld [vmem:[#allocation5 + $0x180] sm:$0xf]
    %v217 = vld [vmem:[#allocation5 + $0x184] sm:$0xf]
    %v218 = vld [vmem:[#allocation5 + $0x188] sm:$0xf]
    %v219 = vld [vmem:[#allocation5 + $0x18c] sm:$0xf]
    %v220 = vld [vmem:[#allocation5 + $0x190] sm:$0xf]
    %v221 = vld [vmem:[#allocation5 + $0x194] sm:$0xf]
    %v222 = vld [vmem:[#allocation5 + $0x198] sm:$0xf]
    %v223 = vld [vmem:[#allocation5 + $0x19c] sm:$0xf]
    %v224 = vld [vmem:[#allocation5 + $0x1a0] sm:$0xf]
    %v225 = vld [vmem:[#allocation5 + $0x1a4] sm:$0xf]
    %v226 = vld [vmem:[#allocation5 + $0x1a8] sm:$0xf]
    %v227 = vld [vmem:[#allocation5 + $0x1ac] sm:$0xf]
    %v228 = vld [vmem:[#allocation5 + $0x1b0] sm:$0xf]
    %v229 = vld [vmem:[#allocation5 + $0x1b4] sm:$0xf]
    %v230 = vld [vmem:[#allocation5 + $0x1b8] sm:$0xf]
    %v231 = vld [vmem:[#allocation5 + $0x1bc] sm:$0xf]
    %v232 = vld [vmem:[#allocation5 + $0x1c0] sm:$0xf]
    %v233 = vld [vmem:[#allocation5 + $0x1c4] sm:$0xf]
    %v234 = vld [vmem:[#allocation5 + $0x1c8] sm:$0xf]
    %v235 = vld [vmem:[#allocation5 + $0x1cc] sm:$0xf]
    %v236 = vld [vmem:[#allocation5 + $0x1d0] sm:$0xf]
    %v237 = vld [vmem:[#allocation5 + $0x1d4] sm:$0xf]
    %v238 = vld [vmem:[#allocation5 + $0x1d8] sm:$0xf]
    %v239 = vld [vmem:[#allocation5 + $0x1dc] sm:$0xf]
    %v240 = vld [vmem:[#allocation5 + $0x1e0] sm:$0xf]
    %v241 = vld [vmem:[#allocation5 + $0x1e4] sm:$0xf]
    %v242 = vld [vmem:[#allocation5 + $0x1e8] sm:$0xf]
    %v243 = vld [vmem:[#allocation5 + $0x1ec] sm:$0xf]
    %v244 = vld [vmem:[#allocation5 + $0x1f0] sm:$0xf]
    %v245 = vld [vmem:[#allocation5 + $0x1f4] sm:$0xf]
    %v246 = vld [vmem:[#allocation5 + $0x1f8] sm:$0xf]
    %v247 = vld [vmem:[#allocation5 + $0x1fc] sm:$0xf]
    %v248 = vld [vmem:[#allocation5 + $0x200] sm:$0xf]
    %v249 = vld [vmem:[#allocation5 + $0x204] sm:$0xf]
    %v250 = vld [vmem:[#allocation5 + $0x208] sm:$0xf]
    %v251 = vld [vmem:[#allocation5 + $0x20c] sm:$0xf]
    %v252 = vld [vmem:[#allocation5 + $0x210] sm:$0xf]
    %v253 = vld [vmem:[#allocation5 + $0x214] sm:$0xf]
    %v254 = vld [vmem:[#allocation5 + $0x218] sm:$0xf]
    %v255 = vld [vmem:[#allocation5 + $0x21c] sm:$0xf]
    %v256 = vld [vmem:[#allocation5 + $0x220] sm:$0xf]
    %v257 = vld [vmem:[#allocation5 + $0x224] sm:$0xf]
    %v258 = vld [vmem:[#allocation5 + $0x228] sm:$0xf]
    %v259 = vld [vmem:[#allocation5 + $0x22c] sm:$0xf]
    %v260 = vld [vmem:[#allocation5 + $0x230] sm:$0xf]
    %v261 = vld [vmem:[#allocation5 + $0x234] sm:$0xf]
    %v262 = vld [vmem:[#allocation5 + $0x238] sm:$0xf]
    %v263 = vld [vmem:[#allocation5 + $0x23c] sm:$0xf]
    %v264 = vld [vmem:[#allocation5 + $0x240] sm:$0xf]
    %v265 = vld [vmem:[#allocation5 + $0x244] sm:$0xf]
    %v266 = vld [vmem:[#allocation5 + $0x248] sm:$0xf]
    %v267 = vld [vmem:[#allocation5 + $0x24c] sm:$0xf]
    %v268 = vld [vmem:[#allocation5 + $0x250] sm:$0xf]
    %v269 = vld [vmem:[#allocation5 + $0x254] sm:$0xf]
    %v270 = vld [vmem:[#allocation5 + $0x258] sm:$0xf]
    %v271 = vld [vmem:[#allocation5 + $0x25c] sm:$0xf]
    %v272 = vld [vmem:[#allocation5 + $0x260] sm:$0xf]
    %v273 = vld [vmem:[#allocation5 + $0x264] sm:$0xf]
    %v274 = vld [vmem:[#allocation5 + $0x268] sm:$0xf]
    %v275 = vld [vmem:[#allocation5 + $0x26c] sm:$0xf]
    %v276 = vld [vmem:[#allocation5 + $0x270] sm:$0xf]
    %v277 = vld [vmem:[#allocation5 + $0x274] sm:$0xf]
    %v278 = vld [vmem:[#allocation5 + $0x278] sm:$0xf]
    %v279 = vld [vmem:[#allocation5 + $0x27c] sm:$0xf]
    %v280 = vld [vmem:[#allocation5 + $0x280] sm:$0xf]
    %v281 = vld [vmem:[#allocation5 + $0x284] sm:$0xf]
    %v282 = vld [vmem:[#allocation5 + $0x288] sm:$0xf]
    %v283 = vld [vmem:[#allocation5 + $0x28c] sm:$0xf]
    %v284 = vld [vmem:[#allocation5 + $0x290] sm:$0xf]
    %v285 = vld [vmem:[#allocation5 + $0x294] sm:$0xf]
    %v286 = vld [vmem:[#allocation5 + $0x298] sm:$0xf]
    %v287 = vld [vmem:[#allocation5 + $0x29c] sm:$0xf]
    %v288 = vld [vmem:[#allocation5 + $0x2a0] sm:$0xf]
    %v289 = vld [vmem:[#allocation5 + $0x2a4] sm:$0xf]
    %v290 = vld [vmem:[#allocation5 + $0x2a8] sm:$0xf]
    %v291 = vld [vmem:[#allocation5 + $0x2ac] sm:$0xf]
    %v292 = vld [vmem:[#allocation5 + $0x2b0] sm:$0xf]
    %v293 = vld [vmem:[#allocation5 + $0x2b4] sm:$0xf]
    %v294 = vld [vmem:[#allocation5 + $0x2b8] sm:$0xf]
    %v295 = vld [vmem:[#allocation5 + $0x2bc] sm:$0xf]
    %v296 = vld [vmem:[#allocation5 + $0x2c0] sm:$0xf]
    %v297 = vld [vmem:[#allocation5 + $0x2c4] sm:$0xf]
    %v298 = vld [vmem:[#allocation5 + $0x2c8] sm:$0xf]
    %v299 = vld [vmem:[#allocation5 + $0x2cc] sm:$0xf]
    %v300 = vld [vmem:[#allocation5 + $0x2d0] sm:$0xf]
    %v301 = vld [vmem:[#allocation5 + $0x2d4] sm:$0xf]
    %v302 = vld [vmem:[#allocation5 + $0x2d8] sm:$0xf]
    %v303 = vld [vmem:[#allocation5 + $0x2dc] sm:$0xf]
    %v304 = vld [vmem:[#allocation5 + $0x2e0] sm:$0xf]
    %v305 = vld [vmem:[#allocation5 + $0x2e4] sm:$0xf]
    %v306 = vld [vmem:[#allocation5 + $0x2e8] sm:$0xf]
    %v307 = vld [vmem:[#allocation5 + $0x2ec] sm:$0xf]
    %v308 = vld [vmem:[#allocation5 + $0x2f0] sm:$0xf]
    %v309 = vld [vmem:[#allocation5 + $0x2f4] sm:$0xf]
    %v310 = vld [vmem:[#allocation5 + $0x2f8] sm:$0xf]
    %v311 = vld [vmem:[#allocation5 + $0x2fc] sm:$0xf]
    %v312 = vld [vmem:[#allocation5 + $0x300] sm:$0xf]
    %v313 = vld [vmem:[#allocation5 + $0x304] sm:$0xf]
    %v314 = vld [vmem:[#allocation5 + $0x308] sm:$0xf]
    %v315 = vld [vmem:[#allocation5 + $0x30c] sm:$0xf]
    %v316 = vld [vmem:[#allocation5 + $0x310] sm:$0xf]
    %v317 = vld [vmem:[#allocation5 + $0x314] sm:$0xf]
    %v318 = vld [vmem:[#allocation5 + $0x318] sm:$0xf]
    %v319 = vld [vmem:[#allocation5 + $0x31c] sm:$0xf]
    %v320 = vld [vmem:[#allocation5 + $0x320] sm:$0xf]
    %v321 = vld [vmem:[#allocation5 + $0x324] sm:$0xf]
    %v322 = vld [vmem:[#allocation5 + $0x328] sm:$0xf]
    %v323 = vld [vmem:[#allocation5 + $0x32c] sm:$0xf]
    %v324 = vld [vmem:[#allocation5 + $0x330] sm:$0xf]
    %v325 = vld [vmem:[#allocation5 + $0x334] sm:$0xf]
    %v326 = vld [vmem:[#allocation5 + $0x338] sm:$0xf]
    %v327 = vld [vmem:[#allocation5 + $0x33c] sm:$0xf]
    %v328 = vld [vmem:[#allocation5 + $0x340] sm:$0xf]
    %v329 = vld [vmem:[#allocation5 + $0x344] sm:$0xf]
    %v330 = vld [vmem:[#allocation5 + $0x348] sm:$0xf]
    %v331 = vld [vmem:[#allocation5 + $0x34c] sm:$0xf]
    %v332 = vld [vmem:[#allocation5 + $0x350] sm:$0xf]
    %v333 = vld [vmem:[#allocation5 + $0x354] sm:$0xf]
    %v334 = vld [vmem:[#allocation5 + $0x358] sm:$0xf]
    %v335 = vld [vmem:[#allocation5 + $0x35c] sm:$0xf]
    %v336 = vld [vmem:[#allocation5 + $0x360] sm:$0xf]
    %v337 = vld [vmem:[#allocation5 + $0x364] sm:$0xf]
    %v338 = vld [vmem:[#allocation5 + $0x368] sm:$0xf]
    %v339 = vld [vmem:[#allocation5 + $0x36c] sm:$0xf]
    %v340 = vld [vmem:[#allocation5 + $0x370] sm:$0xf]
    %v341 = vld [vmem:[#allocation5 + $0x374] sm:$0xf]
    %v342 = vld [vmem:[#allocation5 + $0x378] sm:$0xf]
    %v343 = vld [vmem:[#allocation5 + $0x37c] sm:$0xf]
    %v344 = vld [vmem:[#allocation5 + $0x380] sm:$0xf]
    %v345 = vld [vmem:[#allocation5 + $0x384] sm:$0xf]
    %v346 = vld [vmem:[#allocation5 + $0x388] sm:$0xf]
    %v347 = vld [vmem:[#allocation5 + $0x38c] sm:$0xf]
    %v348 = vld [vmem:[#allocation5 + $0x390] sm:$0xf]
    %v349 = vld [vmem:[#allocation5 + $0x394] sm:$0xf]
    %v350 = vld [vmem:[#allocation5 + $0x398] sm:$0xf]
    %v351 = vld [vmem:[#allocation5 + $0x39c] sm:$0xf]
    %v352 = vld [vmem:[#allocation5 + $0x3a0] sm:$0xf]
    %v353 = vld [vmem:[#allocation5 + $0x3a4] sm:$0xf]
    %v354 = vld [vmem:[#allocation5 + $0x3a8] sm:$0xf]
    %v355 = vld [vmem:[#allocation5 + $0x3ac] sm:$0xf]
    %v356 = vld [vmem:[#allocation5 + $0x3b0] sm:$0xf]
    %v357 = vld [vmem:[#allocation5 + $0x3b4] sm:$0xf]
    %v358 = vld [vmem:[#allocation5 + $0x3b8] sm:$0xf]
    %v359 = vld [vmem:[#allocation5 + $0x3bc] sm:$0xf]
    %v360 = vld [vmem:[#allocation5 + $0x3c0] sm:$0xf]
    %v361 = vld [vmem:[#allocation5 + $0x3c4] sm:$0xf]
    %v362 = vld [vmem:[#allocation5 + $0x3c8] sm:$0xf]
    %v363 = vld [vmem:[#allocation5 + $0x3cc] sm:$0xf]
    %v364 = vld [vmem:[#allocation5 + $0x3d0] sm:$0xf]
    %v365 = vld [vmem:[#allocation5 + $0x3d4] sm:$0xf]
    %v366 = vld [vmem:[#allocation5 + $0x3d8] sm:$0xf]
    %v367 = vld [vmem:[#allocation5 + $0x3dc] sm:$0xf]
    %v368 = vld [vmem:[#allocation5 + $0x3e0] sm:$0xf]
    %v369 = vld [vmem:[#allocation5 + $0x3e4] sm:$0xf]
    %v370 = vld [vmem:[#allocation5 + $0x3e8] sm:$0xf]
    %v371 = vld [vmem:[#allocation5 + $0x3ec] sm:$0xf]
    %v372 = vld [vmem:[#allocation5 + $0x3f0] sm:$0xf]
    %v373 = vld [vmem:[#allocation5 + $0x3f4] sm:$0xf]
    %v374 = vld [vmem:[#allocation5 + $0x3f8] sm:$0xf]
    %v375 = vld [vmem:[#allocation5 + $0x3fc] sm:$0xf]
    %v376 = vld [vmem:[%s2] sm:$0x1]
    %v378 = vperm.slane %v376, 0
    %v636 = vunpack.c.l.b16 %v120
    %v637 = vunpack.c.l.b16 %v121
    %v638 = vunpack.c.l.b16 %v122
    %v639 = vunpack.c.l.b16 %v123
    %v640 = vunpack.c.l.b16 %v124
    %v641 = vunpack.c.l.b16 %v125
    %v642 = vunpack.c.l.b16 %v126
    %v643 = vunpack.c.l.b16 %v127
    %v644 = vunpack.c.l.b16 %v128
    %v645 = vunpack.c.l.b16 %v129
    %v646 = vunpack.c.l.b16 %v130
    %v647 = vunpack.c.l.b16 %v131
    %v648 = vunpack.c.l.b16 %v132
    %v649 = vunpack.c.l.b16 %v133
    %v650 = vunpack.c.l.b16 %v134
    %v651 = vunpack.c.l.b16 %v135
    %v652 = vunpack.c.l.b16 %v136
    %v653 = vunpack.c.l.b16 %v137
    %v654 = vunpack.c.l.b16 %v138
    %v655 = vunpack.c.l.b16 %v139
    %v656 = vunpack.c.l.b16 %v140
    %v657 = vunpack.c.l.b16 %v141
    %v658 = vunpack.c.l.b16 %v142
    %v659 = vunpack.c.l.b16 %v143
    %v660 = vunpack.c.l.b16 %v144
    %v661 = vunpack.c.l.b16 %v145
    %v662 = vunpack.c.l.b16 %v146
    %v663 = vunpack.c.l.b16 %v147
    %v664 = vunpack.c.l.b16 %v148
    %v665 = vunpack.c.l.b16 %v149
    %v666 = vunpack.c.l.b16 %v150
    %v667 = vunpack.c.l.b16 %v151
    %v668 = vunpack.c.l.b16 %v152
    %v669 = vunpack.c.l.b16 %v153
    %v670 = vunpack.c.l.b16 %v154
    %v671 = vunpack.c.l.b16 %v155
    %v672 = vunpack.c.l.b16 %v156
    %v673 = vunpack.c.l.b16 %v157
    %v674 = vunpack.c.l.b16 %v158
    %v675 = vunpack.c.l.b16 %v159
    %v676 = vunpack.c.l.b16 %v160
    %v677 = vunpack.c.l.b16 %v161
    %v678 = vunpack.c.l.b16 %v162
    %v679 = vunpack.c.l.b16 %v163
    %v680 = vunpack.c.l.b16 %v164
    %v681 = vunpack.c.l.b16 %v165
    %v682 = vunpack.c.l.b16 %v166
    %v683 = vunpack.c.l.b16 %v167
    %v684 = vunpack.c.l.b16 %v168
    %v685 = vunpack.c.l.b16 %v169
    %v686 = vunpack.c.l.b16 %v170
    %v687 = vunpack.c.l.b16 %v171
    %v688 = vunpack.c.l.b16 %v172
    %v689 = vunpack.c.l.b16 %v173
    %v690 = vunpack.c.l.b16 %v174
    %v691 = vunpack.c.l.b16 %v175
    %v692 = vunpack.c.l.b16 %v176
    %v693 = vunpack.c.l.b16 %v177
    %v694 = vunpack.c.l.b16 %v178
    %v695 = vunpack.c.l.b16 %v179
    %v696 = vunpack.c.l.b16 %v180
    %v697 = vunpack.c.l.b16 %v181
    %v698 = vunpack.c.l.b16 %v182
    %v699 = vunpack.c.l.b16 %v183
    %v700 = vunpack.c.l.b16 %v184
    %v701 = vunpack.c.l.b16 %v185
    %v702 = vunpack.c.l.b16 %v186
    %v703 = vunpack.c.l.b16 %v187
    %v704 = vunpack.c.l.b16 %v188
    %v705 = vunpack.c.l.b16 %v189
    %v706 = vunpack.c.l.b16 %v190
    %v707 = vunpack.c.l.b16 %v191
    %v708 = vunpack.c.l.b16 %v192
    %v709 = vunpack.c.l.b16 %v193
    %v710 = vunpack.c.l.b16 %v194
    %v711 = vunpack.c.l.b16 %v195
    %v712 = vunpack.c.l.b16 %v196
    %v713 = vunpack.c.l.b16 %v197
    %v714 = vunpack.c.l.b16 %v198
    %v715 = vunpack.c.l.b16 %v199
    %v716 = vunpack.c.l.b16 %v200
    %v717 = vunpack.c.l.b16 %v201
    %v718 = vunpack.c.l.b16 %v202
    %v719 = vunpack.c.l.b16 %v203
    %v720 = vunpack.c.l.b16 %v204
    %v721 = vunpack.c.l.b16 %v205
    %v722 = vunpack.c.l.b16 %v206
    %v723 = vunpack.c.l.b16 %v207
    %v724 = vunpack.c.l.b16 %v208
    %v725 = vunpack.c.l.b16 %v209
    %v726 = vunpack.c.l.b16 %v210
    %v727 = vunpack.c.l.b16 %v211
    %v728 = vunpack.c.l.b16 %v212
    %v729 = vunpack.c.l.b16 %v213
    %v730 = vunpack.c.l.b16 %v214
    %v731 = vunpack.c.l.b16 %v215
    %v732 = vunpack.c.l.b16 %v216
    %v733 = vunpack.c.l.b16 %v217
    %v734 = vunpack.c.l.b16 %v218
    %v735 = vunpack.c.l.b16 %v219
    %v736 = vunpack.c.l.b16 %v220
    %v737 = vunpack.c.l.b16 %v221
    %v738 = vunpack.c.l.b16 %v222
    %v739 = vunpack.c.l.b16 %v223
    %v740 = vunpack.c.l.b16 %v224
    %v741 = vunpack.c.l.b16 %v225
    %v742 = vunpack.c.l.b16 %v226
    %v743 = vunpack.c.l.b16 %v227
    %v744 = vunpack.c.l.b16 %v228
    %v745 = vunpack.c.l.b16 %v229
    %v746 = vunpack.c.l.b16 %v230
    %v747 = vunpack.c.l.b16 %v231
    %v748 = vunpack.c.l.b16 %v232
    %v749 = vunpack.c.l.b16 %v233
    %v750 = vunpack.c.l.b16 %v234
    %v751 = vunpack.c.l.b16 %v235
    %v752 = vunpack.c.l.b16 %v236
    %v753 = vunpack.c.l.b16 %v237
    %v754 = vunpack.c.l.b16 %v238
    %v755 = vunpack.c.l.b16 %v239
    %v756 = vunpack.c.l.b16 %v240
    %v757 = vunpack.c.l.b16 %v241
    %v758 = vunpack.c.l.b16 %v242
    %v759 = vunpack.c.l.b16 %v243
    %v760 = vunpack.c.l.b16 %v244
    %v761 = vunpack.c.l.b16 %v245
    %v762 = vunpack.c.l.b16 %v246
    %v763 = vunpack.c.l.b16 %v247
    %v764 = vunpack.c.l.b16 %v248
    %v765 = vunpack.c.l.b16 %v249
    %v766 = vunpack.c.l.b16 %v250
    %v767 = vunpack.c.l.b16 %v251
    %v768 = vunpack.c.l.b16 %v252
    %v769 = vunpack.c.l.b16 %v253
    %v770 = vunpack.c.l.b16 %v254
    %v771 = vunpack.c.l.b16 %v255
    %v772 = vunpack.c.l.b16 %v256
    %v773 = vunpack.c.l.b16 %v257
    %v774 = vunpack.c.l.b16 %v258
    %v775 = vunpack.c.l.b16 %v259
    %v776 = vunpack.c.l.b16 %v260
    %v777 = vunpack.c.l.b16 %v261
    %v778 = vunpack.c.l.b16 %v262
    %v779 = vunpack.c.l.b16 %v263
    %v780 = vunpack.c.l.b16 %v264
    %v781 = vunpack.c.l.b16 %v265
    %v782 = vunpack.c.l.b16 %v266
    %v783 = vunpack.c.l.b16 %v267
    %v784 = vunpack.c.l.b16 %v268
    %v785 = vunpack.c.l.b16 %v269
    %v786 = vunpack.c.l.b16 %v270
    %v787 = vunpack.c.l.b16 %v271
    %v788 = vunpack.c.l.b16 %v272
    %v789 = vunpack.c.l.b16 %v273
    %v790 = vunpack.c.l.b16 %v274
    %v791 = vunpack.c.l.b16 %v275
    %v792 = vunpack.c.l.b16 %v276
    %v793 = vunpack.c.l.b16 %v277
    %v794 = vunpack.c.l.b16 %v278
    %v795 = vunpack.c.l.b16 %v279
    %v796 = vunpack.c.l.b16 %v280
    %v797 = vunpack.c.l.b16 %v281
    %v798 = vunpack.c.l.b16 %v282
    %v799 = vunpack.c.l.b16 %v283
    %v800 = vunpack.c.l.b16 %v284
    %v801 = vunpack.c.l.b16 %v285
    %v802 = vunpack.c.l.b16 %v286
    %v803 = vunpack.c.l.b16 %v287
    %v804 = vunpack.c.l.b16 %v288
    %v805 = vunpack.c.l.b16 %v289
    %v806 = vunpack.c.l.b16 %v290
    %v807 = vunpack.c.l.b16 %v291
    %v808 = vunpack.c.l.b16 %v292
    %v809 = vunpack.c.l.b16 %v293
    %v810 = vunpack.c.l.b16 %v294
    %v811 = vunpack.c.l.b16 %v295
    %v812 = vunpack.c.l.b16 %v296
    %v813 = vunpack.c.l.b16 %v297
    %v814 = vunpack.c.l.b16 %v298
    %v815 = vunpack.c.l.b16 %v299
    %v816 = vunpack.c.l.b16 %v300
    %v817 = vunpack.c.l.b16 %v301
    %v818 = vunpack.c.l.b16 %v302
    %v819 = vunpack.c.l.b16 %v303
    %v820 = vunpack.c.l.b16 %v304
    %v821 = vunpack.c.l.b16 %v305
    %v822 = vunpack.c.l.b16 %v306
    %v823 = vunpack.c.l.b16 %v307
    %v824 = vunpack.c.l.b16 %v308
    %v825 = vunpack.c.l.b16 %v309
    %v826 = vunpack.c.l.b16 %v310
    %v827 = vunpack.c.l.b16 %v311
    %v828 = vunpack.c.l.b16 %v312
    %v829 = vunpack.c.l.b16 %v313
    %v830 = vunpack.c.l.b16 %v314
    %v831 = vunpack.c.l.b16 %v315
    %v832 = vunpack.c.l.b16 %v316
    %v833 = vunpack.c.l.b16 %v317
    %v834 = vunpack.c.l.b16 %v318
    %v835 = vunpack.c.l.b16 %v319
    %v836 = vunpack.c.l.b16 %v320
    %v837 = vunpack.c.l.b16 %v321
    %v838 = vunpack.c.l.b16 %v322
    %v839 = vunpack.c.l.b16 %v323
    %v840 = vunpack.c.l.b16 %v324
    %v841 = vunpack.c.l.b16 %v325
    %v842 = vunpack.c.l.b16 %v326
    %v843 = vunpack.c.l.b16 %v327
    %v844 = vunpack.c.l.b16 %v328
    %v845 = vunpack.c.l.b16 %v329
    %v846 = vunpack.c.l.b16 %v330
    %v847 = vunpack.c.l.b16 %v331
    %v848 = vunpack.c.l.b16 %v332
    %v849 = vunpack.c.l.b16 %v333
    %v850 = vunpack.c.l.b16 %v334
    %v851 = vunpack.c.l.b16 %v335
    %v852 = vunpack.c.l.b16 %v336
    %v853 = vunpack.c.l.b16 %v337
    %v854 = vunpack.c.l.b16 %v338
    %v855 = vunpack.c.l.b16 %v339
    %v856 = vunpack.c.l.b16 %v340
    %v857 = vunpack.c.l.b16 %v341
    %v858 = vunpack.c.l.b16 %v342
    %v859 = vunpack.c.l.b16 %v343
    %v860 = vunpack.c.l.b16 %v344
    %v861 = vunpack.c.l.b16 %v345
    %v862 = vunpack.c.l.b16 %v346
    %v863 = vunpack.c.l.b16 %v347
    %v864 = vunpack.c.l.b16 %v348
    %v865 = vunpack.c.l.b16 %v349
    %v866 = vunpack.c.l.b16 %v350
    %v867 = vunpack.c.l.b16 %v351
    %v868 = vunpack.c.l.b16 %v352
    %v869 = vunpack.c.l.b16 %v353
    %v870 = vunpack.c.l.b16 %v354
    %v871 = vunpack.c.l.b16 %v355
    %v872 = vunpack.c.l.b16 %v356
    %v873 = vunpack.c.l.b16 %v357
    %v874 = vunpack.c.l.b16 %v358
    %v875 = vunpack.c.l.b16 %v359
    %v876 = vunpack.c.l.b16 %v360
    %v877 = vunpack.c.l.b16 %v361
    %v878 = vunpack.c.l.b16 %v362
    %v879 = vunpack.c.l.b16 %v363
    %v880 = vunpack.c.l.b16 %v364
    %v881 = vunpack.c.l.b16 %v365
    %v882 = vunpack.c.l.b16 %v366
    %v883 = vunpack.c.l.b16 %v367
    %v884 = vunpack.c.l.b16 %v368
    %v885 = vunpack.c.l.b16 %v369
    %v886 = vunpack.c.l.b16 %v370
    %v887 = vunpack.c.l.b16 %v371
    %v888 = vunpack.c.l.b16 %v372
    %v889 = vunpack.c.l.b16 %v373
    %v890 = vunpack.c.l.b16 %v374
    %v891 = vunpack.c.l.b16 %v375
    %v892 = vpack.c.b16 %v637, %v636
    %v893 = vpack.c.b16 %v639, %v638
    %v894 = vpack.c.b16 %v641, %v640
    %v895 = vpack.c.b16 %v643, %v642
    %v896 = vpack.c.b16 %v645, %v644
    %v897 = vpack.c.b16 %v647, %v646
    %v898 = vpack.c.b16 %v649, %v648
    %v899 = vpack.c.b16 %v651, %v650
    %v900 = vpack.c.b16 %v653, %v652
    %v901 = vpack.c.b16 %v655, %v654
    %v902 = vpack.c.b16 %v657, %v656
    %v903 = vpack.c.b16 %v659, %v658
    %v904 = vpack.c.b16 %v661, %v660
    %v905 = vpack.c.b16 %v663, %v662
    %v906 = vpack.c.b16 %v665, %v664
    %v907 = vpack.c.b16 %v667, %v666
    %v908 = vpack.c.b16 %v669, %v668
    %v909 = vpack.c.b16 %v671, %v670
    %v910 = vpack.c.b16 %v673, %v672
    %v911 = vpack.c.b16 %v675, %v674
    %v912 = vpack.c.b16 %v677, %v676
    %v913 = vpack.c.b16 %v679, %v678
    %v914 = vpack.c.b16 %v681, %v680
    %v915 = vpack.c.b16 %v683, %v682
    %v916 = vpack.c.b16 %v685, %v684
    %v917 = vpack.c.b16 %v687, %v686
    %v918 = vpack.c.b16 %v689, %v688
    %v919 = vpack.c.b16 %v691, %v690
    %v920 = vpack.c.b16 %v693, %v692
    %v921 = vpack.c.b16 %v695, %v694
    %v922 = vpack.c.b16 %v697, %v696
    %v923 = vpack.c.b16 %v699, %v698
    %v924 = vpack.c.b16 %v701, %v700
    %v925 = vpack.c.b16 %v703, %v702
    %v926 = vpack.c.b16 %v705, %v704
    %v927 = vpack.c.b16 %v707, %v706
    %v928 = vpack.c.b16 %v709, %v708
    %v929 = vpack.c.b16 %v711, %v710
    %v930 = vpack.c.b16 %v713, %v712
    %v931 = vpack.c.b16 %v715, %v714
    %v932 = vpack.c.b16 %v717, %v716
    %v933 = vpack.c.b16 %v719, %v718
    %v934 = vpack.c.b16 %v721, %v720
    %v935 = vpack.c.b16 %v723, %v722
    %v936 = vpack.c.b16 %v725, %v724
    %v937 = vpack.c.b16 %v727, %v726
    %v938 = vpack.c.b16 %v729, %v728
    %v939 = vpack.c.b16 %v731, %v730
    %v940 = vpack.c.b16 %v733, %v732
    %v941 = vpack.c.b16 %v735, %v734
    %v942 = vpack.c.b16 %v737, %v736
    %v943 = vpack.c.b16 %v739, %v738
    %v944 = vpack.c.b16 %v741, %v740
    %v945 = vpack.c.b16 %v743, %v742
    %v946 = vpack.c.b16 %v745, %v744
    %v947 = vpack.c.b16 %v747, %v746
    %v948 = vpack.c.b16 %v749, %v748
    %v949 = vpack.c.b16 %v751, %v750
    %v950 = vpack.c.b16 %v753, %v752
    %v951 = vpack.c.b16 %v755, %v754
    %v952 = vpack.c.b16 %v757, %v756
    %v953 = vpack.c.b16 %v759, %v758
    %v954 = vpack.c.b16 %v761, %v760
    %v955 = vpack.c.b16 %v763, %v762
    %v956 = vpack.c.b16 %v765, %v764
    %v957 = vpack.c.b16 %v767, %v766
    %v958 = vpack.c.b16 %v769, %v768
    %v959 = vpack.c.b16 %v771, %v770
    %v960 = vpack.c.b16 %v773, %v772
    %v961 = vpack.c.b16 %v775, %v774
    %v962 = vpack.c.b16 %v777, %v776
    %v963 = vpack.c.b16 %v779, %v778
    %v964 = vpack.c.b16 %v781, %v780
    %v965 = vpack.c.b16 %v783, %v782
    %v966 = vpack.c.b16 %v785, %v784
    %v967 = vpack.c.b16 %v787, %v786
    %v968 = vpack.c.b16 %v789, %v788
    %v969 = vpack.c.b16 %v791, %v790
    %v970 = vpack.c.b16 %v793, %v792
    %v971 = vpack.c.b16 %v795, %v794
    %v972 = vpack.c.b16 %v797, %v796
    %v973 = vpack.c.b16 %v799, %v798
    %v974 = vpack.c.b16 %v801, %v800
    %v975 = vpack.c.b16 %v803, %v802
    %v976 = vpack.c.b16 %v805, %v804
    %v977 = vpack.c.b16 %v807, %v806
    %v978 = vpack.c.b16 %v809, %v808
    %v979 = vpack.c.b16 %v811, %v810
    %v980 = vpack.c.b16 %v813, %v812
    %v981 = vpack.c.b16 %v815, %v814
    %v982 = vpack.c.b16 %v817, %v816
    %v983 = vpack.c.b16 %v819, %v818
    %v984 = vpack.c.b16 %v821, %v820
    %v985 = vpack.c.b16 %v823, %v822
    %v986 = vpack.c.b16 %v825, %v824
    %v987 = vpack.c.b16 %v827, %v826
    %v988 = vpack.c.b16 %v829, %v828
    %v989 = vpack.c.b16 %v831, %v830
    %v990 = vpack.c.b16 %v833, %v832
    %v991 = vpack.c.b16 %v835, %v834
    %v992 = vpack.c.b16 %v837, %v836
    %v993 = vpack.c.b16 %v839, %v838
    %v994 = vpack.c.b16 %v841, %v840
    %v995 = vpack.c.b16 %v843, %v842
    %v996 = vpack.c.b16 %v845, %v844
    %v997 = vpack.c.b16 %v847, %v846
    %v998 = vpack.c.b16 %v849, %v848
    %v999 = vpack.c.b16 %v851, %v850
    %v1000 = vpack.c.b16 %v853, %v852
    %v1001 = vpack.c.b16 %v855, %v854
    %v1002 = vpack.c.b16 %v857, %v856
    %v1003 = vpack.c.b16 %v859, %v858
    %v1004 = vpack.c.b16 %v861, %v860
    %v1005 = vpack.c.b16 %v863, %v862
    %v1006 = vpack.c.b16 %v865, %v864
    %v1007 = vpack.c.b16 %v867, %v866
    %v1008 = vpack.c.b16 %v869, %v868
    %v1009 = vpack.c.b16 %v871, %v870
    %v1010 = vpack.c.b16 %v873, %v872
    %v1011 = vpack.c.b16 %v875, %v874
    %v1012 = vpack.c.b16 %v877, %v876
    %v1013 = vpack.c.b16 %v879, %v878
    %v1014 = vpack.c.b16 %v881, %v880
    %v1015 = vpack.c.b16 %v883, %v882
    %v1016 = vpack.c.b16 %v885, %v884
    %v1017 = vpack.c.b16 %v887, %v886
    %v1018 = vpack.c.b16 %v889, %v888
    %v1019 = vpack.c.b16 %v891, %v890
    %1148 = vmatpush.bf16.msra.mxu0 %v899
    %1149 = vmatpush.bf16.msra.mxu0 %v898
    %1150 = vmatpush.bf16.msra.mxu0 %v897
    %1151 = vmatpush.bf16.msra.mxu0 %v896
    %1152 = vmatpush.bf16.msra.mxu0 %v895
    %1153 = vmatpush.bf16.msra.mxu0 %v894
    %1154 = vmatpush.bf16.msra.mxu0 %v893
    %1155 = vmatpush.bf16.msra.mxu0 %v892
    %1156 = vmatmul.bf16.gmra.mxu0 %v104
    %v1157 = vpop.f32.mrf.mxu0
    %v1158 = vadd.f32 %v378, %v1157
    %v1159 = vpop.f32.mrf.mxu0
    %1160 = vdwg.mxu0
    %1161 = vmatpush.bf16.msra.mxu0 %v907
    %1162 = vmatpush.bf16.msra.mxu0 %v906
    %1163 = vmatpush.bf16.msra.mxu0 %v905
    %1164 = vmatpush.bf16.msra.mxu0 %v904
    %1165 = vmatpush.bf16.msra.mxu0 %v903
    %1166 = vmatpush.bf16.msra.mxu0 %v902
    %1167 = vmatpush.bf16.msra.mxu0 %v901
    %1168 = vmatpush.bf16.msra.mxu0 %v900
    %1169 = vmatmul.bf16.gmra.mxu0 %v105
    %v1170 = vpop.f32.mrf.mxu0
    %v1171 = vadd.f32 %v1158, %v1170
    %v1172 = vpop.f32.mrf.mxu0
    %1173 = vdwg.mxu0
    %1174 = vmatpush.bf16.msra.mxu0 %v915
    %1175 = vmatpush.bf16.msra.mxu0 %v914
    %1176 = vmatpush.bf16.msra.mxu0 %v913
    %1177 = vmatpush.bf16.msra.mxu0 %v912
    %1178 = vmatpush.bf16.msra.mxu0 %v911
    %1179 = vmatpush.bf16.msra.mxu0 %v910
    %1180 = vmatpush.bf16.msra.mxu0 %v909
    %1181 = vmatpush.bf16.msra.mxu0 %v908
    %1182 = vmatmul.bf16.gmra.mxu0 %v106
    %v1183 = vpop.f32.mrf.mxu0
    %v1184 = vadd.f32 %v1171, %v1183
    %v1185 = vpop.f32.mrf.mxu0
    %1186 = vdwg.mxu0
    %1187 = vmatpush.bf16.msra.mxu0 %v923
    %1188 = vmatpush.bf16.msra.mxu0 %v922
    %1189 = vmatpush.bf16.msra.mxu0 %v921
    %1190 = vmatpush.bf16.msra.mxu0 %v920
    %1191 = vmatpush.bf16.msra.mxu0 %v919
    %1192 = vmatpush.bf16.msra.mxu0 %v918
    %1193 = vmatpush.bf16.msra.mxu0 %v917
    %1194 = vmatpush.bf16.msra.mxu0 %v916
    %1195 = vmatmul.bf16.gmra.mxu0 %v107
    %v1196 = vpop.f32.mrf.mxu0
    %v1197 = vadd.f32 %v1184, %v1196
    %v1198 = vpop.f32.mrf.mxu0
    %1199 = vdwg.mxu0
    %1200 = vmatpush.bf16.msra.mxu0 %v931
    %1201 = vmatpush.bf16.msra.mxu0 %v930
    %1202 = vmatpush.bf16.msra.mxu0 %v929
    %1203 = vmatpush.bf16.msra.mxu0 %v928
    %1204 = vmatpush.bf16.msra.mxu0 %v927
    %1205 = vmatpush.bf16.msra.mxu0 %v926
    %1206 = vmatpush.bf16.msra.mxu0 %v925
    %1207 = vmatpush.bf16.msra.mxu0 %v924
    %1208 = vmatmul.bf16.gmra.mxu0 %v108
    %v1209 = vpop.f32.mrf.mxu0
    %v1210 = vadd.f32 %v1197, %v1209
    %v1211 = vpop.f32.mrf.mxu0
    %1212 = vdwg.mxu0
    %1213 = vmatpush.bf16.msra.mxu0 %v939
    %1214 = vmatpush.bf16.msra.mxu0 %v938
    %1215 = vmatpush.bf16.msra.mxu0 %v937
    %1216 = vmatpush.bf16.msra.mxu0 %v936
    %1217 = vmatpush.bf16.msra.mxu0 %v935
    %1218 = vmatpush.bf16.msra.mxu0 %v934
    %1219 = vmatpush.bf16.msra.mxu0 %v933
    %1220 = vmatpush.bf16.msra.mxu0 %v932
    %1221 = vmatmul.bf16.gmra.mxu0 %v109
    %v1222 = vpop.f32.mrf.mxu0
    %v1223 = vadd.f32 %v1210, %v1222
    %v1224 = vpop.f32.mrf.mxu0
    %1225 = vdwg.mxu0
    %1226 = vmatpush.bf16.msra.mxu0 %v947
    %1227 = vmatpush.bf16.msra.mxu0 %v946
    %1228 = vmatpush.bf16.msra.mxu0 %v945
    %1229 = vmatpush.bf16.msra.mxu0 %v944
    %1230 = vmatpush.bf16.msra.mxu0 %v943
    %1231 = vmatpush.bf16.msra.mxu0 %v942
    %1232 = vmatpush.bf16.msra.mxu0 %v941
    %1233 = vmatpush.bf16.msra.mxu0 %v940
    %1234 = vmatmul.bf16.gmra.mxu0 %v110
    %v1235 = vpop.f32.mrf.mxu0
    %v1236 = vadd.f32 %v1223, %v1235
    %v1237 = vpop.f32.mrf.mxu0
    %1238 = vdwg.mxu0
    %1239 = vmatpush.bf16.msra.mxu0 %v955
    %1240 = vmatpush.bf16.msra.mxu0 %v954
    %1241 = vmatpush.bf16.msra.mxu0 %v953
    %1242 = vmatpush.bf16.msra.mxu0 %v952
    %1243 = vmatpush.bf16.msra.mxu0 %v951
    %1244 = vmatpush.bf16.msra.mxu0 %v950
    %1245 = vmatpush.bf16.msra.mxu0 %v949
    %1246 = vmatpush.bf16.msra.mxu0 %v948
    %1247 = vmatmul.bf16.gmra.mxu0 %v111
    %v1248 = vpop.f32.mrf.mxu0
    %v1249 = vadd.f32 %v1236, %v1248
    %v1250 = vpop.f32.mrf.mxu0
    %1251 = vdwg.mxu0
    %1252 = vmatpush.bf16.msra.mxu0 %v963
    %1253 = vmatpush.bf16.msra.mxu0 %v962
    %1254 = vmatpush.bf16.msra.mxu0 %v961
    %1255 = vmatpush.bf16.msra.mxu0 %v960
    %1256 = vmatpush.bf16.msra.mxu0 %v959
    %1257 = vmatpush.bf16.msra.mxu0 %v958
    %1258 = vmatpush.bf16.msra.mxu0 %v957
    %1259 = vmatpush.bf16.msra.mxu0 %v956
    %1260 = vmatmul.bf16.gmra.mxu0 %v112
    %v1261 = vpop.f32.mrf.mxu0
    %v1262 = vadd.f32 %v1249, %v1261
    %v1263 = vpop.f32.mrf.mxu0
    %1264 = vdwg.mxu0
    %1265 = vmatpush.bf16.msra.mxu0 %v971
    %1266 = vmatpush.bf16.msra.mxu0 %v970
    %1267 = vmatpush.bf16.msra.mxu0 %v969
    %1268 = vmatpush.bf16.msra.mxu0 %v968
    %1269 = vmatpush.bf16.msra.mxu0 %v967
    %1270 = vmatpush.bf16.msra.mxu0 %v966
    %1271 = vmatpush.bf16.msra.mxu0 %v965
    %1272 = vmatpush.bf16.msra.mxu0 %v964
    %1273 = vmatmul.bf16.gmra.mxu0 %v113
    %v1274 = vpop.f32.mrf.mxu0
    %v1275 = vadd.f32 %v1262, %v1274
    %v1276 = vpop.f32.mrf.mxu0
    %1277 = vdwg.mxu0
    %1278 = vmatpush.bf16.msra.mxu0 %v979
    %1279 = vmatpush.bf16.msra.mxu0 %v978
    %1280 = vmatpush.bf16.msra.mxu0 %v977
    %1281 = vmatpush.bf16.msra.mxu0 %v976
    %1282 = vmatpush.bf16.msra.mxu0 %v975
    %1283 = vmatpush.bf16.msra.mxu0 %v974
    %1284 = vmatpush.bf16.msra.mxu0 %v973
    %1285 = vmatpush.bf16.msra.mxu0 %v972
    %1286 = vmatmul.bf16.gmra.mxu0 %v114
    %v1287 = vpop.f32.mrf.mxu0
    %v1288 = vadd.f32 %v1275, %v1287
    %v1289 = vpop.f32.mrf.mxu0
    %1290 = vdwg.mxu0
    %1291 = vmatpush.bf16.msra.mxu0 %v987
    %1292 = vmatpush.bf16.msra.mxu0 %v986
    %1293 = vmatpush.bf16.msra.mxu0 %v985
    %1294 = vmatpush.bf16.msra.mxu0 %v984
    %1295 = vmatpush.bf16.msra.mxu0 %v983
    %1296 = vmatpush.bf16.msra.mxu0 %v982
    %1297 = vmatpush.bf16.msra.mxu0 %v981
    %1298 = vmatpush.bf16.msra.mxu0 %v980
    %1299 = vmatmul.bf16.gmra.mxu0 %v115
    %v1300 = vpop.f32.mrf.mxu0
    %v1301 = vadd.f32 %v1288, %v1300
    %v1302 = vpop.f32.mrf.mxu0
    %1303 = vdwg.mxu0
    %1304 = vmatpush.bf16.msra.mxu0 %v995
    %1305 = vmatpush.bf16.msra.mxu0 %v994
    %1306 = vmatpush.bf16.msra.mxu0 %v993
    %1307 = vmatpush.bf16.msra.mxu0 %v992
    %1308 = vmatpush.bf16.msra.mxu0 %v991
    %1309 = vmatpush.bf16.msra.mxu0 %v990
    %1310 = vmatpush.bf16.msra.mxu0 %v989
    %1311 = vmatpush.bf16.msra.mxu0 %v988
    %1312 = vmatmul.bf16.gmra.mxu0 %v116
    %v1313 = vpop.f32.mrf.mxu0
    %v1314 = vadd.f32 %v1301, %v1313
    %v1315 = vpop.f32.mrf.mxu0
    %1316 = vdwg.mxu0
    %1317 = vmatpush.bf16.msra.mxu0 %v1003
    %1318 = vmatpush.bf16.msra.mxu0 %v1002
    %1319 = vmatpush.bf16.msra.mxu0 %v1001
    %1320 = vmatpush.bf16.msra.mxu0 %v1000
    %1321 = vmatpush.bf16.msra.mxu0 %v999
    %1322 = vmatpush.bf16.msra.mxu0 %v998
    %1323 = vmatpush.bf16.msra.mxu0 %v997
    %1324 = vmatpush.bf16.msra.mxu0 %v996
    %1325 = vmatmul.bf16.gmra.mxu0 %v117
    %v1326 = vpop.f32.mrf.mxu0
    %v1327 = vadd.f32 %v1314, %v1326
    %v1328 = vpop.f32.mrf.mxu0
    %1329 = vdwg.mxu0
    %1330 = vmatpush.bf16.msra.mxu0 %v1011
    %1331 = vmatpush.bf16.msra.mxu0 %v1010
    %1332 = vmatpush.bf16.msra.mxu0 %v1009
    %1333 = vmatpush.bf16.msra.mxu0 %v1008
    %1334 = vmatpush.bf16.msra.mxu0 %v1007
    %1335 = vmatpush.bf16.msra.mxu0 %v1006
    %1336 = vmatpush.bf16.msra.mxu0 %v1005
    %1337 = vmatpush.bf16.msra.mxu0 %v1004
    %1338 = vmatmul.bf16.gmra.mxu0 %v118
    %v1339 = vpop.f32.mrf.mxu0
    %v1340 = vadd.f32 %v1327, %v1339
    %v1341 = vpop.f32.mrf.mxu0
    %1342 = vdwg.mxu0
    %1343 = vmatpush.bf16.msra.mxu0 %v1019
    %1344 = vmatpush.bf16.msra.mxu0 %v1018
    %1345 = vmatpush.bf16.msra.mxu0 %v1017
    %1346 = vmatpush.bf16.msra.mxu0 %v1016
    %1347 = vmatpush.bf16.msra.mxu0 %v1015
    %1348 = vmatpush.bf16.msra.mxu0 %v1014
    %1349 = vmatpush.bf16.msra.mxu0 %v1013
    %1350 = vmatpush.bf16.msra.mxu0 %v1012
    %1351 = vmatmul.bf16.gmra.mxu0 %v119
    %v1352 = vpop.f32.mrf.mxu0
    %v1353 = vadd.f32 %v1340, %v1352
    %v1354 = vpop.f32.mrf.mxu0
    %1355 = vdwg.mxu0
    %v1356 = vmax.f32 %v1353, 0.0
    %v1357 = vpack.c.bf16 %v1356, %v1356
    %v1358 = vld [vmem:[#allocation7] sm:$0xf]
    %v1359 = vld [vmem:[#allocation7 + $0x4] sm:$0xf]
    %v1360 = vld [vmem:[#allocation7 + $0x8] sm:$0xf]
    %v1361 = vld [vmem:[#allocation7 + $0xc] sm:$0xf]
    %v1362 = vld [vmem:[#allocation7 + $0x10] sm:$0xf]
    %v1363 = vld [vmem:[#allocation7 + $0x14] sm:$0xf]
    %v1364 = vld [vmem:[#allocation7 + $0x18] sm:$0xf]
    %v1365 = vld [vmem:[#allocation7 + $0x1c] sm:$0xf]
    %v1366 = vld [vmem:[#allocation7 + $0x20] sm:$0xf]
    %v1367 = vld [vmem:[#allocation7 + $0x24] sm:$0xf]
    %v1368 = vld [vmem:[#allocation7 + $0x28] sm:$0xf]
    %v1369 = vld [vmem:[#allocation7 + $0x2c] sm:$0xf]
    %v1370 = vld [vmem:[#allocation7 + $0x30] sm:$0xf]
    %v1371 = vld [vmem:[#allocation7 + $0x34] sm:$0xf]
    %v1372 = vld [vmem:[#allocation7 + $0x38] sm:$0xf]
    %v1373 = vld [vmem:[#allocation7 + $0x3c] sm:$0xf]
    %v1374 = vld [vmem:[%s4] sm:$0x1]
    %v1376 = vperm.slane %v1374, 0
    %v1394 = vunpack.c.l.b16 %v1358
    %v1395 = vunpack.c.l.b16 %v1359
    %v1396 = vunpack.c.l.b16 %v1360
    %v1397 = vunpack.c.l.b16 %v1361
    %v1398 = vunpack.c.l.b16 %v1362
    %v1399 = vunpack.c.l.b16 %v1363
    %v1400 = vunpack.c.l.b16 %v1364
    %v1401 = vunpack.c.l.b16 %v1365
    %v1402 = vunpack.c.l.b16 %v1366
    %v1403 = vunpack.c.l.b16 %v1367
    %v1404 = vunpack.c.l.b16 %v1368
    %v1405 = vunpack.c.l.b16 %v1369
    %v1406 = vunpack.c.l.b16 %v1370
    %v1407 = vunpack.c.l.b16 %v1371
    %v1408 = vunpack.c.l.b16 %v1372
    %v1409 = vunpack.c.l.b16 %v1373
    %v1410 = vpack.c.b16 %v1395, %v1394
    %v1411 = vpack.c.b16 %v1397, %v1396
    %v1412 = vpack.c.b16 %v1399, %v1398
    %v1413 = vpack.c.b16 %v1401, %v1400
    %v1414 = vpack.c.b16 %v1403, %v1402
    %v1415 = vpack.c.b16 %v1405, %v1404
    %v1416 = vpack.c.b16 %v1407, %v1406
    %v1417 = vpack.c.b16 %v1409, %v1408
    %1426 = vmatpush.bf16.msra.mxu0 %v1417
    %1427 = vmatpush.bf16.msra.mxu0 %v1416
    %1428 = vmatpush.bf16.msra.mxu0 %v1415
    %1429 = vmatpush.bf16.msra.mxu0 %v1414
    %1430 = vmatpush.bf16.msra.mxu0 %v1413
    %1431 = vmatpush.bf16.msra.mxu0 %v1412
    %1432 = vmatpush.bf16.msra.mxu0 %v1411
    %1433 = vmatpush.bf16.msra.mxu0 %v1410
    %1434 = vmatmul.bf16.gmra.mxu0 %v1357
    %v1435 = vpop.f32.mrf.mxu0
    %v1436 = vadd.f32 %v1376, %v1435
    %v1437 = vpop.f32.mrf.mxu0
    %1438 = vdwg.mxu0
    %v1439 = vmax.f32 %v1436, 0.0
    %v1440 = vpack.c.bf16 %v1439, %v1439
    %v1441 = vld [vmem:[#allocation8] sm:$0xf]
    %v1442 = vld [vmem:[#allocation8 + $0x4] sm:$0xf]
    %v1443 = vld [vmem:[#allocation8 + $0x8] sm:$0xf]
    %v1444 = vld [vmem:[#allocation8 + $0xc] sm:$0xf]
    %v1445 = vld [vmem:[#allocation8 + $0x10] sm:$0xf]
    %v1446 = vld [vmem:[#allocation8 + $0x14] sm:$0xf]
    %v1447 = vld [vmem:[#allocation8 + $0x18] sm:$0xf]
    %v1448 = vld [vmem:[#allocation8 + $0x1c] sm:$0xf]
    %v1449 = vld [vmem:[#allocation8 + $0x20] sm:$0xf]
    %v1450 = vld [vmem:[#allocation8 + $0x24] sm:$0xf]
    %v1451 = vld [vmem:[#allocation8 + $0x28] sm:$0xf]
    %v1452 = vld [vmem:[#allocation8 + $0x2c] sm:$0xf]
    %v1453 = vld [vmem:[#allocation8 + $0x30] sm:$0xf]
    %v1454 = vld [vmem:[#allocation8 + $0x34] sm:$0xf]
    %v1455 = vld [vmem:[#allocation8 + $0x38] sm:$0xf]
    %v1456 = vld [vmem:[#allocation8 + $0x3c] sm:$0xf]
    %v1457 = vld [vmem:[%s6] sm:$0x1]
    %v1459 = vperm.slane %v1457, 0
    %v1477 = vunpack.c.l.b16 %v1441
    %v1478 = vunpack.c.l.b16 %v1442
    %v1479 = vunpack.c.l.b16 %v1443
    %v1480 = vunpack.c.l.b16 %v1444
    %v1481 = vunpack.c.l.b16 %v1445
    %v1482 = vunpack.c.l.b16 %v1446
    %v1483 = vunpack.c.l.b16 %v1447
    %v1484 = vunpack.c.l.b16 %v1448
    %v1485 = vunpack.c.l.b16 %v1449
    %v1486 = vunpack.c.l.b16 %v1450
    %v1487 = vunpack.c.l.b16 %v1451
    %v1488 = vunpack.c.l.b16 %v1452
    %v1489 = vunpack.c.l.b16 %v1453
    %v1490 = vunpack.c.l.b16 %v1454
    %v1491 = vunpack.c.l.b16 %v1455
    %v1492 = vunpack.c.l.b16 %v1456
    %v1493 = vpack.c.b16 %v1478, %v1477
    %v1494 = vpack.c.b16 %v1480, %v1479
    %v1495 = vpack.c.b16 %v1482, %v1481
    %v1496 = vpack.c.b16 %v1484, %v1483
    %v1497 = vpack.c.b16 %v1486, %v1485
    %v1498 = vpack.c.b16 %v1488, %v1487
    %v1499 = vpack.c.b16 %v1490, %v1489
    %v1500 = vpack.c.b16 %v1492, %v1491
    %1509 = vmatpush.bf16.msra.mxu0 %v1500
    %1510 = vmatpush.bf16.msra.mxu0 %v1499
    %1511 = vmatpush.bf16.msra.mxu0 %v1498
    %1512 = vmatpush.bf16.msra.mxu0 %v1497
    %1513 = vmatpush.bf16.msra.mxu0 %v1496
    %1514 = vmatpush.bf16.msra.mxu0 %v1495
    %1515 = vmatpush.bf16.msra.mxu0 %v1494
    %1516 = vmatpush.bf16.msra.mxu0 %v1493
    %1517 = vmatmul.bf16.gmra.mxu0 %v1440
    %v1518 = vpop.f32.mrf.mxu0
    %v1519 = vadd.f32 %v1459, %v1518
    %v1520 = vpop.f32.mrf.mxu0
    %1521 = vdwg.mxu0
    %v1522 = vmax.f32 %v1519, 0.0
    %1523 = vst [vmem:[#allocation10] sm:$0xff] %v1522
    // Predicated region
    $region46: #{tpu_custom_call.1} parent=1 // pred_check
      _
    $region47: #{tpu_custom_call.1} parent=1 // pred_check_branch
      %1525 = sbr.rel (0) target = $region49
    $region48: #{tpu_custom_call.1} parent=1 // pred_region
      %1527 = vsyncadd [#allocation4], 0
      %s1529 = sshll.u32 [#allocation10], 4
      %s1530 = int_to_ptr.vmem [resolvable:$true] %s1529
      %s1531 = sshll.u32 %s7, 4
      %s1532 = int_to_ptr.hbm [resolvable:$true] %s1531
      %1534 = dma.vmem_to_hbm [thread:$0]  %s1530, 128, %s1532, [#allocation4]
    $region49: #{tpu_custom_call.1} parent=1 // pred_fallthru
      _
    // Predicated region
    $region50: #{tpu_custom_call.1} parent=1 // pred_check
      _
    $region51: #{tpu_custom_call.1} parent=1 // pred_check_branch
      %1536 = sbr.rel (0) target = $region53
    $region52: #{tpu_custom_call.1} parent=1 // pred_region
      %1538 = dma.done [#allocation4], 128
    $region53: #{tpu_custom_call.1} parent=1 // pred_fallthru
      _
    %1539 = vsyncpa [#allocation3], 1
    %1540 = vsyncpa [#allocation6], 1
    %1541 = vsyncpa [#allocation9], 1
    %1542 = vsyncpa [#allocation4], 1

</llo_original>
